<compile_context>
chip_gen: v6e
topology: v6e:2x2x1
jax: 0.10.0
libtpu: 0.0.40
codegen_flags: <defaults>
</compile_context>

<pallas_src>
import functools

import jax
import jax.numpy as jnp
from jax.experimental import pallas as pl
from jax.experimental.pallas import tpu as pltpu


def _autoencoder_kernel(w1_ref, b1_ref, w2_ref, b2_ref, x_ref, o_ref):
    # x_ref / o_ref : (4, TR, 128) f32 in VMEM  (per-channel voxel planes,
    #                 fully packed (8,128) vreg tiles)
    # w1_ref (3, 4), b1_ref (3,), w2_ref (4, 3), b2_ref (4,) : f32 in SMEM
    x = [x_ref[c] for c in range(4)]              # each (TR, 128)

    # Encoder: Conv3d(4 -> 3, k=1) + ReLU  -> 12 scalar-broadcast MACs (VPU)
    h = []
    for c in range(3):
        acc = x[0] * w1_ref[c, 0]
        for k in range(1, 4):
            acc = acc + x[k] * w1_ref[c, k]
        h.append(jnp.maximum(acc + b1_ref[c], 0.0))

    # Decoder: ConvTranspose3d(3 -> 4, k=1) + Sigmoid -> 12 MACs + EUP sigmoid
    for c in range(4):
        acc = h[0] * w2_ref[c, 0]
        for j in range(1, 3):
            acc = acc + h[j] * w2_ref[c, j]
        o_ref[c] = jax.nn.sigmoid(acc + b2_ref[c]).astype(o_ref.dtype)


def _round_up(x, m):
    return (x + m - 1) // m * m


@functools.partial(jax.jit, static_argnames=("max_tile_m",))
def autoencoder_forward(x_ncdhw, w1, b1, w2, b2, *, max_tile_m=131072):
    """x_ncdhw: (N, 4, D, H, W) float32.  Returns (N, 4, D, H, W)."""
    N, C, D, H, W = x_ncdhw.shape
    assert C == 4, "Expected number of input channels is 4"
    M = D * H * W

    # tile_m: multiple of 1024 so each per-channel block is whole (8, 128)
    # vreg tiles; capped so double-buffered in+out blocks fit default scoped
    # VMEM on every chip generation.
    tile_m = min(max_tile_m, _round_up(M, 1024))
    m_pad = _round_up(M, tile_m)

    # Free view: NCDHW is channel-major per batch element.
    x_flat = x_ncdhw.reshape(N, C, M)
    if m_pad != M:
        x_flat = jnp.pad(x_flat, ((0, 0), (0, 0), (0, m_pad - M)))
    rows = m_pad // 128
    tile_r = tile_m // 128
    x4 = x_flat.reshape(N, C, rows, 128)

    smem_spec = pl.BlockSpec(memory_space=pltpu.MemorySpace.SMEM)
    blk = (None, C, tile_r, 128)                       # squeeze the batch dim
    idx = lambda n, i: (n, 0, i, 0)

    out4 = pl.pallas_call(
        _autoencoder_kernel,
        out_shape=jax.ShapeDtypeStruct((N, C, rows, 128), x_ncdhw.dtype),
        grid_spec=pltpu.PrefetchScalarGridSpec(
            num_scalar_prefetch=0,
            grid=(N, rows // tile_r),
            in_specs=[smem_spec, smem_spec, smem_spec, smem_spec,
                      pl.BlockSpec(blk, idx)],
            out_specs=pl.BlockSpec(blk, idx),
        ),
        compiler_params=pltpu.CompilerParams(
            dimension_semantics=("parallel", "parallel")),
    )(w1, b1, w2, b2, x4)

    out = out4.reshape(N, C, m_pad)[:, :, :M].reshape(N, C, D, H, W)
    return out


def init_params(key):
    """Deterministic init mirroring the PyTorch module's reset_parameters().

    Conv3d(4->3, k=1):          weight (3, 4, 1, 1, 1), bias (3,)  kaiming / zeros
    ConvTranspose3d(3->4, k=1): weight (3, 4, 1, 1, 1), bias (4,)  kaiming / zeros
    """
    k1, k2 = jax.random.split(key)
    # kaiming_normal_: std = sqrt(2 / fan_in); fan_in = 4 * 1*1*1 for both.
    w_enc = jax.random.normal(k1, (3, 4), jnp.float32) * jnp.sqrt(2.0 / 4.0)
    b_enc = jnp.zeros((3,), jnp.float32)
    # ConvTranspose3d weight stored as (in=3, out=4); effective matmul uses
    # its transpose: decoded[c_out] = sum_ci weight[c_in, c_out] * encoded[c_in]
    w_dec_stored = jax.random.normal(k2, (3, 4), jnp.float32) * jnp.sqrt(2.0 / 4.0)
    w_dec = w_dec_stored.T                                   # (4, 3)
    b_dec = jnp.zeros((4,), jnp.float32)
    return w_enc, b_enc, w_dec, b_dec


if __name__ == "__main__":
    key = jax.random.PRNGKey(0)
    k_x, k_p = jax.random.split(key)

    # Small synthetic MRI-like input: batch=2, channels=4, D=H=W=16 (NCDHW).
    x = jax.random.normal(k_x, (2, 4, 16, 16, 16), jnp.float32)
    w1, b1, w2, b2 = init_params(k_p)

    out = autoencoder_forward(x, w1, b1, w2, b2)
    out = jax.block_until_ready(out)

    # Pure-JAX reference of the fused forward pass.
    h_ref = jnp.maximum(
        jnp.einsum("oc,ncdhw->nodhw", w1, x) + b1.reshape(1, 3, 1, 1, 1), 0.0)
    y_ref = jax.nn.sigmoid(
        jnp.einsum("oc,ncdhw->nodhw", w2, h_ref) + b2.reshape(1, 4, 1, 1, 1))
    assert out.shape == x.shape
    assert jnp.allclose(out, y_ref, atol=1e-5, rtol=1e-5)

    print("KERNEL_OK")
</pallas_src>

<mosaic_0001>
module attributes {stable_mosaic.version = 11 : i64} {
  func.func @_autoencoder_kernel(%arg0: i32, %arg1: i32, %arg2: memref<3x4xf32, #tpu.memory_space<smem>>, %arg3: memref<3xf32, #tpu.memory_space<smem>>, %arg4: memref<4x3xf32, #tpu.memory_space<smem>>, %arg5: memref<4xf32, #tpu.memory_space<smem>>, %arg6: memref<1x4x32x128xf32, #tpu.memory_space<vmem>>, %arg7: memref<1x4x32x128xf32, #tpu.memory_space<vmem>>) attributes {dimension_semantics = [#tpu.dimension_semantics<parallel>, #tpu.dimension_semantics<parallel>], iteration_bounds = array<i64: 2, 1>, scalar_prefetch = 0 : i64, scratch_operands = 0 : i64, tpu.core_type = #tpu.core_type<tc>, window_params = [{transform_indices = @transform_0, window_bounds = array<i64: 3, 4>}, {transform_indices = @transform_1, window_bounds = array<i64: 3>}, {transform_indices = @transform_2, window_bounds = array<i64: 4, 3>}, {transform_indices = @transform_3, window_bounds = array<i64: 4>}, {transform_indices = @transform_4, window_bounds = array<i64: 1, 4, 32, 128>}, {transform_indices = @transform_5, window_bounds = array<i64: 1, 4, 32, 128>}]} {
    %c0 = arith.constant 0 : index
    %c0_0 = arith.constant 0 : index
    %c0_1 = arith.constant 0 : index
    %c0_2 = arith.constant 0 : index
    %0 = vector.load %arg6[%c0, %c0_0, %c0_1, %c0_2] : memref<1x4x32x128xf32, #tpu.memory_space<vmem>>, vector<1x1x32x128xf32>
    %1 = vector.shape_cast %0 : vector<1x1x32x128xf32> to vector<32x128xf32>
    %c0_3 = arith.constant 0 : index
    %c1 = arith.constant 1 : index
    %c0_4 = arith.constant 0 : index
    %c0_5 = arith.constant 0 : index
    %2 = vector.load %arg6[%c0_3, %c1, %c0_4, %c0_5] : memref<1x4x32x128xf32, #tpu.memory_space<vmem>>, vector<1x1x32x128xf32>
    %3 = vector.shape_cast %2 : vector<1x1x32x128xf32> to vector<32x128xf32>
    %c0_6 = arith.constant 0 : index
    %c2 = arith.constant 2 : index
    %c0_7 = arith.constant 0 : index
    %c0_8 = arith.constant 0 : index
    %4 = vector.load %arg6[%c0_6, %c2, %c0_7, %c0_8] : memref<1x4x32x128xf32, #tpu.memory_space<vmem>>, vector<1x1x32x128xf32>
    %5 = vector.shape_cast %4 : vector<1x1x32x128xf32> to vector<32x128xf32>
    %c0_9 = arith.constant 0 : index
    %c3 = arith.constant 3 : index
    %c0_10 = arith.constant 0 : index
    %c0_11 = arith.constant 0 : index
    %6 = vector.load %arg6[%c0_9, %c3, %c0_10, %c0_11] : memref<1x4x32x128xf32, #tpu.memory_space<vmem>>, vector<1x1x32x128xf32>
    %7 = vector.shape_cast %6 : vector<1x1x32x128xf32> to vector<32x128xf32>
    %c0_12 = arith.constant 0 : index
    %c0_13 = arith.constant 0 : index
    %8 = memref.load %arg2[%c0_12, %c0_13] : memref<3x4xf32, #tpu.memory_space<smem>>
    %9 = vector.broadcast %8 : f32 to vector<32x128xf32>
    %10 = arith.mulf %1, %9 : vector<32x128xf32>
    %c0_14 = arith.constant 0 : index
    %c1_15 = arith.constant 1 : index
    %11 = memref.load %arg2[%c0_14, %c1_15] : memref<3x4xf32, #tpu.memory_space<smem>>
    %12 = vector.broadcast %11 : f32 to vector<32x128xf32>
    %13 = arith.mulf %3, %12 : vector<32x128xf32>
    %14 = arith.addf %10, %13 : vector<32x128xf32>
    %c0_16 = arith.constant 0 : index
    %c2_17 = arith.constant 2 : index
    %15 = memref.load %arg2[%c0_16, %c2_17] : memref<3x4xf32, #tpu.memory_space<smem>>
    %16 = vector.broadcast %15 : f32 to vector<32x128xf32>
    %17 = arith.mulf %5, %16 : vector<32x128xf32>
    %18 = arith.addf %14, %17 : vector<32x128xf32>
    %c0_18 = arith.constant 0 : index
    %c3_19 = arith.constant 3 : index
    %19 = memref.load %arg2[%c0_18, %c3_19] : memref<3x4xf32, #tpu.memory_space<smem>>
    %20 = vector.broadcast %19 : f32 to vector<32x128xf32>
    %21 = arith.mulf %7, %20 : vector<32x128xf32>
    %22 = arith.addf %18, %21 : vector<32x128xf32>
    %c0_20 = arith.constant 0 : index
    %23 = memref.load %arg3[%c0_20] : memref<3xf32, #tpu.memory_space<smem>>
    %24 = vector.broadcast %23 : f32 to vector<32x128xf32>
    %25 = arith.addf %22, %24 : vector<32x128xf32>
    %cst = arith.constant 0.000000e+00 : f32
    %26 = vector.broadcast %cst : f32 to vector<32x128xf32>
    %27 = arith.maximumf %25, %26 : vector<32x128xf32>
    %c1_21 = arith.constant 1 : index
    %c0_22 = arith.constant 0 : index
    %28 = memref.load %arg2[%c1_21, %c0_22] : memref<3x4xf32, #tpu.memory_space<smem>>
    %29 = vector.broadcast %28 : f32 to vector<32x128xf32>
    %30 = arith.mulf %1, %29 : vector<32x128xf32>
    %c1_23 = arith.constant 1 : index
    %c1_24 = arith.constant 1 : index
    %31 = memref.load %arg2[%c1_23, %c1_24] : memref<3x4xf32, #tpu.memory_space<smem>>
    %32 = vector.broadcast %31 : f32 to vector<32x128xf32>
    %33 = arith.mulf %3, %32 : vector<32x128xf32>
    %34 = arith.addf %30, %33 : vector<32x128xf32>
    %c1_25 = arith.constant 1 : index
    %c2_26 = arith.constant 2 : index
    %35 = memref.load %arg2[%c1_25, %c2_26] : memref<3x4xf32, #tpu.memory_space<smem>>
    %36 = vector.broadcast %35 : f32 to vector<32x128xf32>
    %37 = arith.mulf %5, %36 : vector<32x128xf32>
    %38 = arith.addf %34, %37 : vector<32x128xf32>
    %c1_27 = arith.constant 1 : index
    %c3_28 = arith.constant 3 : index
    %39 = memref.load %arg2[%c1_27, %c3_28] : memref<3x4xf32, #tpu.memory_space<smem>>
    %40 = vector.broadcast %39 : f32 to vector<32x128xf32>
    %41 = arith.mulf %7, %40 : vector<32x128xf32>
    %42 = arith.addf %38, %41 : vector<32x128xf32>
    %c1_29 = arith.constant 1 : index
    %43 = memref.load %arg3[%c1_29] : memref<3xf32, #tpu.memory_space<smem>>
    %44 = vector.broadcast %43 : f32 to vector<32x128xf32>
    %45 = arith.addf %42, %44 : vector<32x128xf32>
    %cst_30 = arith.constant 0.000000e+00 : f32
    %46 = vector.broadcast %cst_30 : f32 to vector<32x128xf32>
    %47 = arith.maximumf %45, %46 : vector<32x128xf32>
    %c2_31 = arith.constant 2 : index
    %c0_32 = arith.constant 0 : index
    %48 = memref.load %arg2[%c2_31, %c0_32] : memref<3x4xf32, #tpu.memory_space<smem>>
    %49 = vector.broadcast %48 : f32 to vector<32x128xf32>
    %50 = arith.mulf %1, %49 : vector<32x128xf32>
    %c2_33 = arith.constant 2 : index
    %c1_34 = arith.constant 1 : index
    %51 = memref.load %arg2[%c2_33, %c1_34] : memref<3x4xf32, #tpu.memory_space<smem>>
    %52 = vector.broadcast %51 : f32 to vector<32x128xf32>
    %53 = arith.mulf %3, %52 : vector<32x128xf32>
    %54 = arith.addf %50, %53 : vector<32x128xf32>
    %c2_35 = arith.constant 2 : index
    %c2_36 = arith.constant 2 : index
    %55 = memref.load %arg2[%c2_35, %c2_36] : memref<3x4xf32, #tpu.memory_space<smem>>
    %56 = vector.broadcast %55 : f32 to vector<32x128xf32>
    %57 = arith.mulf %5, %56 : vector<32x128xf32>
    %58 = arith.addf %54, %57 : vector<32x128xf32>
    %c2_37 = arith.constant 2 : index
    %c3_38 = arith.constant 3 : index
    %59 = memref.load %arg2[%c2_37, %c3_38] : memref<3x4xf32, #tpu.memory_space<smem>>
    %60 = vector.broadcast %59 : f32 to vector<32x128xf32>
    %61 = arith.mulf %7, %60 : vector<32x128xf32>
    %62 = arith.addf %58, %61 : vector<32x128xf32>
    %c2_39 = arith.constant 2 : index
    %63 = memref.load %arg3[%c2_39] : memref<3xf32, #tpu.memory_space<smem>>
    %64 = vector.broadcast %63 : f32 to vector<32x128xf32>
    %65 = arith.addf %62, %64 : vector<32x128xf32>
    %cst_40 = arith.constant 0.000000e+00 : f32
    %66 = vector.broadcast %cst_40 : f32 to vector<32x128xf32>
    %67 = arith.maximumf %65, %66 : vector<32x128xf32>
    %c0_41 = arith.constant 0 : index
    %c0_42 = arith.constant 0 : index
    %68 = memref.load %arg4[%c0_41, %c0_42] : memref<4x3xf32, #tpu.memory_space<smem>>
    %69 = vector.broadcast %68 : f32 to vector<32x128xf32>
    %70 = arith.mulf %27, %69 : vector<32x128xf32>
    %c0_43 = arith.constant 0 : index
    %c1_44 = arith.constant 1 : index
    %71 = memref.load %arg4[%c0_43, %c1_44] : memref<4x3xf32, #tpu.memory_space<smem>>
    %72 = vector.broadcast %71 : f32 to vector<32x128xf32>
    %73 = arith.mulf %47, %72 : vector<32x128xf32>
    %74 = arith.addf %70, %73 : vector<32x128xf32>
    %c0_45 = arith.constant 0 : index
    %c2_46 = arith.constant 2 : index
    %75 = memref.load %arg4[%c0_45, %c2_46] : memref<4x3xf32, #tpu.memory_space<smem>>
    %76 = vector.broadcast %75 : f32 to vector<32x128xf32>
    %77 = arith.mulf %67, %76 : vector<32x128xf32>
    %78 = arith.addf %74, %77 : vector<32x128xf32>
    %c0_47 = arith.constant 0 : index
    %79 = memref.load %arg5[%c0_47] : memref<4xf32, #tpu.memory_space<smem>>
    %80 = vector.broadcast %79 : f32 to vector<32x128xf32>
    %81 = arith.addf %78, %80 : vector<32x128xf32>
    %82 = arith.negf %81 : vector<32x128xf32>
    %83 = math.exp %82 : vector<32x128xf32>
    %cst_48 = arith.constant 1.000000e+00 : f32
    %84 = vector.broadcast %cst_48 : f32 to vector<32x128xf32>
    %85 = arith.addf %84, %83 : vector<32x128xf32>
    %86 = arith.divf %84, %85 : vector<32x128xf32>
    %c0_49 = arith.constant 0 : index
    %c0_50 = arith.constant 0 : index
    %c0_51 = arith.constant 0 : index
    %c0_52 = arith.constant 0 : index
    %87 = vector.load %arg7[%c0_49, %c0_50, %c0_51, %c0_52] : memref<1x4x32x128xf32, #tpu.memory_space<vmem>>, vector<1x1x32x128xf32>
    %88 = vector.shape_cast %87 : vector<1x1x32x128xf32> to vector<32x128xf32>
    %89 = vector.shape_cast %86 : vector<32x128xf32> to vector<1x1x32x128xf32>
    tpu.vector_store %arg7[%c0_49, %c0_50, %c0_51, %c0_52], %89 {strides = array<i32>} : memref<1x4x32x128xf32, #tpu.memory_space<vmem>>, vector<1x1x32x128xf32>,
    %c1_53 = arith.constant 1 : index
    %c0_54 = arith.constant 0 : index
    %90 = memref.load %arg4[%c1_53, %c0_54] : memref<4x3xf32, #tpu.memory_space<smem>>
    %91 = vector.broadcast %90 : f32 to vector<32x128xf32>
    %92 = arith.mulf %27, %91 : vector<32x128xf32>
    %c1_55 = arith.constant 1 : index
    %c1_56 = arith.constant 1 : index
    %93 = memref.load %arg4[%c1_55, %c1_56] : memref<4x3xf32, #tpu.memory_space<smem>>
    %94 = vector.broadcast %93 : f32 to vector<32x128xf32>
    %95 = arith.mulf %47, %94 : vector<32x128xf32>
    %96 = arith.addf %92, %95 : vector<32x128xf32>
    %c1_57 = arith.constant 1 : index
    %c2_58 = arith.constant 2 : index
    %97 = memref.load %arg4[%c1_57, %c2_58] : memref<4x3xf32, #tpu.memory_space<smem>>
    %98 = vector.broadcast %97 : f32 to vector<32x128xf32>
    %99 = arith.mulf %67, %98 : vector<32x128xf32>
    %100 = arith.addf %96, %99 : vector<32x128xf32>
    %c1_59 = arith.constant 1 : index
    %101 = memref.load %arg5[%c1_59] : memref<4xf32, #tpu.memory_space<smem>>
    %102 = vector.broadcast %101 : f32 to vector<32x128xf32>
    %103 = arith.addf %100, %102 : vector<32x128xf32>
    %104 = arith.negf %103 : vector<32x128xf32>
    %105 = math.exp %104 : vector<32x128xf32>
    %cst_60 = arith.constant 1.000000e+00 : f32
    %106 = vector.broadcast %cst_60 : f32 to vector<32x128xf32>
    %107 = arith.addf %106, %105 : vector<32x128xf32>
    %108 = arith.divf %106, %107 : vector<32x128xf32>
    %c0_61 = arith.constant 0 : index
    %c1_62 = arith.constant 1 : index
    %c0_63 = arith.constant 0 : index
    %c0_64 = arith.constant 0 : index
    %109 = vector.load %arg7[%c0_61, %c1_62, %c0_63, %c0_64] : memref<1x4x32x128xf32, #tpu.memory_space<vmem>>, vector<1x1x32x128xf32>
    %110 = vector.shape_cast %109 : vector<1x1x32x128xf32> to vector<32x128xf32>
    %111 = vector.shape_cast %108 : vector<32x128xf32> to vector<1x1x32x128xf32>
    tpu.vector_store %arg7[%c0_61, %c1_62, %c0_63, %c0_64], %111 {strides = array<i32>} : memref<1x4x32x128xf32, #tpu.memory_space<vmem>>, vector<1x1x32x128xf32>,
    %c2_65 = arith.constant 2 : index
    %c0_66 = arith.constant 0 : index
    %112 = memref.load %arg4[%c2_65, %c0_66] : memref<4x3xf32, #tpu.memory_space<smem>>
    %113 = vector.broadcast %112 : f32 to vector<32x128xf32>
    %114 = arith.mulf %27, %113 : vector<32x128xf32>
    %c2_67 = arith.constant 2 : index
    %c1_68 = arith.constant 1 : index
    %115 = memref.load %arg4[%c2_67, %c1_68] : memref<4x3xf32, #tpu.memory_space<smem>>
    %116 = vector.broadcast %115 : f32 to vector<32x128xf32>
    %117 = arith.mulf %47, %116 : vector<32x128xf32>
    %118 = arith.addf %114, %117 : vector<32x128xf32>
    %c2_69 = arith.constant 2 : index
    %c2_70 = arith.constant 2 : index
    %119 = memref.load %arg4[%c2_69, %c2_70] : memref<4x3xf32, #tpu.memory_space<smem>>
    %120 = vector.broadcast %119 : f32 to vector<32x128xf32>
    %121 = arith.mulf %67, %120 : vector<32x128xf32>
    %122 = arith.addf %118, %121 : vector<32x128xf32>
    %c2_71 = arith.constant 2 : index
    %123 = memref.load %arg5[%c2_71] : memref<4xf32, #tpu.memory_space<smem>>
    %124 = vector.broadcast %123 : f32 to vector<32x128xf32>
    %125 = arith.addf %122, %124 : vector<32x128xf32>
    %126 = arith.negf %125 : vector<32x128xf32>
    %127 = math.exp %126 : vector<32x128xf32>
    %cst_72 = arith.constant 1.000000e+00 : f32
    %128 = vector.broadcast %cst_72 : f32 to vector<32x128xf32>
    %129 = arith.addf %128, %127 : vector<32x128xf32>
    %130 = arith.divf %128, %129 : vector<32x128xf32>
    %c0_73 = arith.constant 0 : index
    %c2_74 = arith.constant 2 : index
    %c0_75 = arith.constant 0 : index
    %c0_76 = arith.constant 0 : index
    %131 = vector.load %arg7[%c0_73, %c2_74, %c0_75, %c0_76] : memref<1x4x32x128xf32, #tpu.memory_space<vmem>>, vector<1x1x32x128xf32>
    %132 = vector.shape_cast %131 : vector<1x1x32x128xf32> to vector<32x128xf32>
    %133 = vector.shape_cast %130 : vector<32x128xf32> to vector<1x1x32x128xf32>
    tpu.vector_store %arg7[%c0_73, %c2_74, %c0_75, %c0_76], %133 {strides = array<i32>} : memref<1x4x32x128xf32, #tpu.memory_space<vmem>>, vector<1x1x32x128xf32>,
    %c3_77 = arith.constant 3 : index
    %c0_78 = arith.constant 0 : index
    %134 = memref.load %arg4[%c3_77, %c0_78] : memref<4x3xf32, #tpu.memory_space<smem>>
    %135 = vector.broadcast %134 : f32 to vector<32x128xf32>
    %136 = arith.mulf %27, %135 : vector<32x128xf32>
    %c3_79 = arith.constant 3 : index
    %c1_80 = arith.constant 1 : index
    %137 = memref.load %arg4[%c3_79, %c1_80] : memref<4x3xf32, #tpu.memory_space<smem>>
    %138 = vector.broadcast %137 : f32 to vector<32x128xf32>
    %139 = arith.mulf %47, %138 : vector<32x128xf32>
    %140 = arith.addf %136, %139 : vector<32x128xf32>
    %c3_81 = arith.constant 3 : index
    %c2_82 = arith.constant 2 : index
    %141 = memref.load %arg4[%c3_81, %c2_82] : memref<4x3xf32, #tpu.memory_space<smem>>
    %142 = vector.broadcast %141 : f32 to vector<32x128xf32>
    %143 = arith.mulf %67, %142 : vector<32x128xf32>
    %144 = arith.addf %140, %143 : vector<32x128xf32>
    %c3_83 = arith.constant 3 : index
    %145 = memref.load %arg5[%c3_83] : memref<4xf32, #tpu.memory_space<smem>>
    %146 = vector.broadcast %145 : f32 to vector<32x128xf32>
    %147 = arith.addf %144, %146 : vector<32x128xf32>
    %148 = arith.negf %147 : vector<32x128xf32>
    %149 = math.exp %148 : vector<32x128xf32>
    %cst_84 = arith.constant 1.000000e+00 : f32
    %150 = vector.broadcast %cst_84 : f32 to vector<32x128xf32>
    %151 = arith.addf %150, %149 : vector<32x128xf32>
    %152 = arith.divf %150, %151 : vector<32x128xf32>
    %c0_85 = arith.constant 0 : index
    %c3_86 = arith.constant 3 : index
    %c0_87 = arith.constant 0 : index
    %c0_88 = arith.constant 0 : index
    %153 = vector.load %arg7[%c0_85, %c3_86, %c0_87, %c0_88] : memref<1x4x32x128xf32, #tpu.memory_space<vmem>>, vector<1x1x32x128xf32>
    %154 = vector.shape_cast %153 : vector<1x1x32x128xf32> to vector<32x128xf32>
    %155 = vector.shape_cast %152 : vector<32x128xf32> to vector<1x1x32x128xf32>
    tpu.vector_store %arg7[%c0_85, %c3_86, %c0_87, %c0_88], %155 {strides = array<i32>} : memref<1x4x32x128xf32, #tpu.memory_space<vmem>>, vector<1x1x32x128xf32>,
    return
  }
  func.func @transform_0(%arg0: i32, %arg1: i32) -> (i32, i32) {
    %c0_i32 = arith.constant 0 : i32
    %c0_i32_0 = arith.constant 0 : i32
    %c0_i32_1 = arith.constant 0 : i32
    return %c0_i32, %c0_i32_0 : i32, i32
  }
  func.func @transform_1(%arg0: i32, %arg1: i32) -> i32 {
    %c0_i32 = arith.constant 0 : i32
    %c0_i32_0 = arith.constant 0 : i32
    return %c0_i32 : i32
  }
  func.func @transform_2(%arg0: i32, %arg1: i32) -> (i32, i32) {
    %c0_i32 = arith.constant 0 : i32
    %c0_i32_0 = arith.constant 0 : i32
    %c0_i32_1 = arith.constant 0 : i32
    return %c0_i32, %c0_i32_0 : i32, i32
  }
  func.func @transform_3(%arg0: i32, %arg1: i32) -> i32 {
    %c0_i32 = arith.constant 0 : i32
    %c0_i32_0 = arith.constant 0 : i32
    return %c0_i32 : i32
  }
  func.func @transform_4(%arg0: i32, %arg1: i32) -> (i32, i32, i32, i32) {
    %c0_i32 = arith.constant 0 : i32
    %c0_i32_0 = arith.constant 0 : i32
    %c0_i32_1 = arith.constant 0 : i32
    return %arg0, %c0_i32, %arg1, %c0_i32_0 : i32, i32, i32, i32
  }
  func.func @transform_5(%arg0: i32, %arg1: i32) -> (i32, i32, i32, i32) {
    %c0_i32 = arith.constant 0 : i32
    %c0_i32_0 = arith.constant 0 : i32
    %c0_i32_1 = arith.constant 0 : i32
    return %arg0, %c0_i32, %arg1, %c0_i32_0 : i32, i32, i32, i32
  }
}

</mosaic_0001>

<llo_original>
// kernel: autoencoder_forward.1
$region0: #{autoencoder_forward.1}
  #allocation0 [shape = 'u32[]', space=smem, size = 0x4, offset = 0x4, fixed_abs, tag = 'smem constant byte address 0x4 - core index']
  #allocation1 [shape = 'u32[144,128]{1,0:T(1,128)}', space=vmem, size = 0x12000, scoped, tag = 'internal scratch']
  %s0 = inlined_call_operand.vmem [shape: f32[3,4], index: 0, kind: input, shape index: {}]
  %s1 = inlined_call_operand.vmem [shape: f32[3], index: 1, kind: input, shape index: {}]
  %s2 = inlined_call_operand.vmem [shape: f32[4,3], index: 2, kind: input, shape index: {}]
  %s3 = inlined_call_operand.vmem [shape: f32[4], index: 3, kind: input, shape index: {}]
  %s4 = inlined_call_operand.vmem [shape: f32[2,4,32,128], index: 4, kind: input, shape index: {}]
  %s5 = inlined_call_operand.vmem [shape: f32[2,4,32,128], index: 5, kind: output, shape index: {}]
  %s6 = sld [smem:[#allocation0]]
  $region69: #{autoencoder_forward.1} parent=0
    _
  %s8 = ssub.s32 1, %s6
  %s9 = scalar_select 0, %s8, %s6
  $region1: #{autoencoder_forward.1} parent=0
    #allocation2 [shape = 'u8[2048]{0}', space=smem, size = 0x800, scoped, tag = 'input window, operand 0, single buffered']
    #allocation3 [shape = 's32[2]{0}', space=sflag, size = 0x8, scoped, tag = 'scoped memory for autoencoder_forward.1']
    #allocation4 [shape = 'u8[512]{0}', space=smem, size = 0x200, scoped, tag = 'input window, operand 1, single buffered']
    #allocation5 [shape = 's32[1]{0}', space=sflag, size = 0x4, scoped, tag = 'scoped memory for autoencoder_forward.1']
    #allocation6 [shape = 'u8[2048]{0}', space=smem, size = 0x800, scoped, tag = 'input window, operand 2, single buffered']
    #allocation7 [shape = 'u8[512]{0}', space=smem, size = 0x200, scoped, tag = 'input window, operand 3, single buffered']
    #allocation8 [shape = 's32[1]{0}', space=sflag, size = 0x4, scoped, tag = 'scoped memory for autoencoder_forward.1']
    %10 = vsyncpa [#allocation3], 0
    %11 = vsyncpa [#allocation5], 0
    %12 = vsyncpa [#allocation8], 0
    loop: start=0, step=1, limit=4
    $region2: #{autoencoder_forward.1} parent=1 // loop_pre_header
      _
    $region3: #{autoencoder_forward.1} parent=1 // loop_header
      %s14 = sphi 0, %s18
      %p15 = scmp.ge.s32.totalorder %s14, 4
      %s21 = sphi 0, %s33
      %s22 = sphi 0, %s29
      %s23 = sphi 0, %s21
      %s24 = sphi 0, %s22
      %s25 = sphi 0, %s23
      %s26 = sphi 0, %s24
      %s34 = sphi 0, %s34
      %s36 = sphi 0, %s34
      %s37 = sphi 0, %s36
      %s51 = sphi 0, %s37
      %s55 = sphi 0, %s55
      %s57 = sphi 0, %s55
      %s58 = sphi 0, %s57
      %s72 = sphi 0, %s58
      %s76 = sphi 0, %s76
      %s78 = sphi 0, %s76
      %s79 = sphi 0, %s78
      %s93 = sphi 0, %s79
      %s97 = sphi 0, %s97
      %s99 = sphi 0, %s97
      %s100 = sphi 0, %s99
      %s114 = sphi 0, %s100
      %s122 = sphi 0, %s124
      %s125 = sphi 0, %s122
      %s126 = sphi 0, %s125
      %s142 = sphi 0, %s126
      %s150 = sphi 0, %s152
      %s153 = sphi 0, %s150
      %s154 = sphi 0, %s153
      %s170 = sphi 0, %s154
    $region4: #{autoencoder_forward.1} parent=1 // loop_header_branch
      %17 = sbr.rel (%p15) target = $region8
    $region5: #{autoencoder_forward.1} parent=1 // loop_body
      %s19 = ssub.s32 %s14, 1
      %s20 = ssub.s32 %s14, 2
      %s27 = sadd.s32 1, %s22
      %p28 = scmp.ge.s32.totalorder %s27, 1
      %s29 = scalar_select %p28, 0, %s27
      %s30 = sadd.s32 1, %s21
      %s31 = scalar_select %p28, %s30, %s21
      %p32 = scmp.ge.s32.totalorder %s31, 2
      %s33 = scalar_select %p32, 0, %s31
      %s35 = sadd.s32 %s34, 1
      %p38 = scmp.eq.s32.totalorder %s14, 1
      %p39 = scmp.ne.s32.totalorder %s34, %s36
      %p40 = scmp.eq.s32.totalorder %s14, 0
      %p41 = por %p39, %p40
      %p42 = scmp.ne.s32.totalorder %s34, %s36
      %p43 = scmp.eq.s32.totalorder %s19, 1
      %p44 = por %p42, %p43
      %p45 = scmp.ne.s32.totalorder %s36, %s37
      %p46 = scmp.eq.s32.totalorder %s19, 0
      %p47 = por %p45, %p46
      %p48 = scmp.ne.s32.totalorder %s36, %s37
      %p49 = scmp.eq.s32.totalorder %s20, 1
      %p50 = por %p48, %p49
      %p52 = scmp.ne.s32.totalorder %s37, %s51
      %p53 = scmp.eq.s32.totalorder %s20, 0
      %p54 = por %p52, %p53
      %s56 = sadd.s32 %s55, 1
      %p59 = scmp.eq.s32.totalorder %s14, 1
      %p60 = scmp.ne.s32.totalorder %s55, %s57
      %p61 = scmp.eq.s32.totalorder %s14, 0
      %p62 = por %p60, %p61
      %p63 = scmp.ne.s32.totalorder %s55, %s57
      %p64 = scmp.eq.s32.totalorder %s19, 1
      %p65 = por %p63, %p64
      %p66 = scmp.ne.s32.totalorder %s57, %s58
      %p67 = scmp.eq.s32.totalorder %s19, 0
      %p68 = por %p66, %p67
      %p69 = scmp.ne.s32.totalorder %s57, %s58
      %p70 = scmp.eq.s32.totalorder %s20, 1
      %p71 = por %p69, %p70
      %p73 = scmp.ne.s32.totalorder %s58, %s72
      %p74 = scmp.eq.s32.totalorder %s20, 0
      %p75 = por %p73, %p74
      %s77 = sadd.s32 %s76, 1
      %p80 = scmp.eq.s32.totalorder %s14, 1
      %p81 = scmp.ne.s32.totalorder %s76, %s78
      %p82 = scmp.eq.s32.totalorder %s14, 0
      %p83 = por %p81, %p82
      %p84 = scmp.ne.s32.totalorder %s76, %s78
      %p85 = scmp.eq.s32.totalorder %s19, 1
      %p86 = por %p84, %p85
      %p87 = scmp.ne.s32.totalorder %s78, %s79
      %p88 = scmp.eq.s32.totalorder %s19, 0
      %p89 = por %p87, %p88
      %p90 = scmp.ne.s32.totalorder %s78, %s79
      %p91 = scmp.eq.s32.totalorder %s20, 1
      %p92 = por %p90, %p91
      %p94 = scmp.ne.s32.totalorder %s79, %s93
      %p95 = scmp.eq.s32.totalorder %s20, 0
      %p96 = por %p94, %p95
      %s98 = sadd.s32 %s97, 1
      %p101 = scmp.eq.s32.totalorder %s14, 1
      %p102 = scmp.ne.s32.totalorder %s97, %s99
      %p103 = scmp.eq.s32.totalorder %s14, 0
      %p104 = por %p102, %p103
      %p105 = scmp.ne.s32.totalorder %s97, %s99
      %p106 = scmp.eq.s32.totalorder %s19, 1
      %p107 = por %p105, %p106
      %p108 = scmp.ne.s32.totalorder %s99, %s100
      %p109 = scmp.eq.s32.totalorder %s19, 0
      %p110 = por %p108, %p109
      %p111 = scmp.ne.s32.totalorder %s99, %s100
      %p112 = scmp.eq.s32.totalorder %s20, 1
      %p113 = por %p111, %p112
      %p115 = scmp.ne.s32.totalorder %s100, %s114
      %p116 = scmp.eq.s32.totalorder %s20, 0
      %p117 = por %p115, %p116
      %s118 = ssub.s32 %s21, %s33
      %s119 = ssub.s32 %s22, %s29
      %s120 = sor.u32 %s118, %s119
      %p121 = scmp.eq.s32.totalorder %s120, 0
      %s123 = sadd.s32 %s122, 1
      %s124 = scalar_select %p121, %s122, %s123
      %p127 = pneg %p121
      %p128 = scmp.eq.s32.totalorder %s14, 1
      %p129 = por %p127, %p128
      %p130 = scmp.ne.s32.totalorder %s122, %s125
      %p131 = scmp.eq.s32.totalorder %s14, 0
      %p132 = por %p130, %p131
      %p133 = scmp.ne.s32.totalorder %s122, %s125
      %p134 = scmp.eq.s32.totalorder %s19, 1
      %p135 = por %p133, %p134
      %p136 = scmp.ne.s32.totalorder %s125, %s126
      %p137 = scmp.eq.s32.totalorder %s19, 0
      %p138 = por %p136, %p137
      %p139 = scmp.ne.s32.totalorder %s125, %s126
      %p140 = scmp.eq.s32.totalorder %s20, 1
      %p141 = por %p139, %p140
      %p143 = scmp.ne.s32.totalorder %s126, %s142
      %p144 = scmp.eq.s32.totalorder %s20, 0
      %p145 = por %p143, %p144
      %s146 = ssub.s32 %s21, %s33
      %s147 = ssub.s32 %s22, %s29
      %s148 = sor.u32 %s146, %s147
      %p149 = scmp.eq.s32.totalorder %s148, 0
      %s151 = sadd.s32 %s150, 1
      %s152 = scalar_select %p149, %s150, %s151
      %p155 = pneg %p149
      %p156 = scmp.eq.s32.totalorder %s14, 1
      %p157 = por %p155, %p156
      %p158 = scmp.ne.s32.totalorder %s150, %s153
      %p159 = scmp.eq.s32.totalorder %s14, 0
      %p160 = por %p158, %p159
      %p161 = scmp.ne.s32.totalorder %s150, %s153
      %p162 = scmp.eq.s32.totalorder %s19, 1
      %p163 = por %p161, %p162
      %p164 = scmp.ne.s32.totalorder %s153, %s154
      %p165 = scmp.eq.s32.totalorder %s19, 0
      %p166 = por %p164, %p165
      %p167 = scmp.ne.s32.totalorder %s153, %s154
      %p168 = scmp.eq.s32.totalorder %s20, 1
      %p169 = por %p167, %p168
      %p171 = scmp.ne.s32.totalorder %s154, %s170
      %p172 = scmp.eq.s32.totalorder %s20, 0
      %p173 = por %p171, %p172
      %p174 = scmp.le.s32.totalorder 1, %s14
      %p175 = scmp.lt.s32.totalorder %s14, 3
      %p176 = pnand %p174, %p175
      %p177 = pneg %p176
      // Predicated region
      $region9: #{autoencoder_forward.1} parent=5 // pred_check
        _
      $region10: #{autoencoder_forward.1} parent=5 // pred_check_branch
        %179 = sbr.rel (%p176) target = $region12
      $region11: #{autoencoder_forward.1} parent=5 // pred_region
        %s180 = ssub.s32 %s14, 1
        // Predicated region
        $region13: #{autoencoder_forward.1} parent=11 // pred_check
          %p181 = pneg %p47
        $region14: #{autoencoder_forward.1} parent=11 // pred_check_branch
          %183 = sbr.rel (%p181) target = $region16
        $region15: #{autoencoder_forward.1} parent=11 // pred_region
          %s185 = ssub.s32 64, 64
          %186 = vsyncadd [#allocation3], %s185
          %s188 = sshll.u32 %s0, 4
          %s189 = int_to_ptr.vmem [resolvable:$true] %s188
          %191 = dma.vmem_to_smem %s189, 64, [#allocation2], [#allocation3]
        $region16: #{autoencoder_forward.1} parent=11 // pred_fallthru
          _
        // Predicated region
        $region17: #{autoencoder_forward.1} parent=11 // pred_check
          %p192 = pneg %p68
        $region18: #{autoencoder_forward.1} parent=11 // pred_check_branch
          %194 = sbr.rel (%p192) target = $region20
        $region19: #{autoencoder_forward.1} parent=11 // pred_region
          %s196 = ssub.s32 16, 16
          %197 = vsyncadd [#allocation5], %s196
          %s199 = sshll.u32 %s1, 4
          %s200 = int_to_ptr.vmem [resolvable:$true] %s199
          %202 = dma.vmem_to_smem %s200, 16, [#allocation4], [#allocation5]
        $region20: #{autoencoder_forward.1} parent=11 // pred_fallthru
          _
        // Predicated region
        $region21: #{autoencoder_forward.1} parent=11 // pred_check
          %p203 = pneg %p89
        $region22: #{autoencoder_forward.1} parent=11 // pred_check_branch
          %205 = sbr.rel (%p203) target = $region24
        $region23: #{autoencoder_forward.1} parent=11 // pred_region
          %s207 = ssub.s32 64, 64
          %208 = vsyncadd [#allocation5], %s207
          %s210 = sshll.u32 %s2, 4
          %s211 = int_to_ptr.vmem [resolvable:$true] %s210
          %213 = dma.vmem_to_smem %s211, 64, [#allocation6], [#allocation5]
        $region24: #{autoencoder_forward.1} parent=11 // pred_fallthru
          _
        // Predicated region
        $region25: #{autoencoder_forward.1} parent=11 // pred_check
          %p214 = pneg %p110
        $region26: #{autoencoder_forward.1} parent=11 // pred_check_branch
          %216 = sbr.rel (%p214) target = $region28
        $region27: #{autoencoder_forward.1} parent=11 // pred_region
          %s218 = ssub.s32 16, 16
          %219 = vsyncadd [#allocation8], %s218
          %s221 = sshll.u32 %s3, 4
          %s222 = int_to_ptr.vmem [resolvable:$true] %s221
          %224 = dma.vmem_to_smem %s222, 16, [#allocation7], [#allocation8]
        $region28: #{autoencoder_forward.1} parent=11 // pred_fallthru
          _
      $region12: #{autoencoder_forward.1} parent=5 // pred_fallthru
        _
      %p225 = scmp.lt.s32.totalorder %s14, 2
      // Predicated region
      $region29: #{autoencoder_forward.1} parent=5 // pred_check
        %p226 = pneg %p225
      $region30: #{autoencoder_forward.1} parent=5 // pred_check_branch
        %228 = sbr.rel (%p226) target = $region32
      $region31: #{autoencoder_forward.1} parent=5 // pred_region
        // Predicated region
        $region33: #{autoencoder_forward.1} parent=31 // pred_check
          %p229 = pneg %p132
        $region34: #{autoencoder_forward.1} parent=31 // pred_check_branch
          %231 = sbr.rel (%p229) target = $region36
        $region35: #{autoencoder_forward.1} parent=31 // pred_region
          %s232 = smul.u32 4, %s22
          %p233 = scmp.lt.s32.totalorder %s21, 1
          %s234 = scalar_select %p233, %s21, 1
          %p235 = scmp.lt.s32.totalorder %s232, 3
          %s236 = scalar_select %p235, %s232, 3
          %s237 = smul.addr %s234, 16
          %s238 = sadd.s32 %s236, %s237
          %s239 = smul.addr %s238, 8
          %s240 = scalar_lea.vmem %s4, %s239
          %s241 = smul.u32 4, %s22
        $region36: #{autoencoder_forward.1} parent=31 // pred_fallthru
          _
      $region32: #{autoencoder_forward.1} parent=5 // pred_fallthru
        _
      %p242 = scmp.le.s32.totalorder 1, %s14
      %p243 = scmp.lt.s32.totalorder %s14, 3
      %p244 = pnand %p242, %p243
      %p245 = pneg %p244
      // Predicated region
      $region37: #{autoencoder_forward.1} parent=5 // pred_check
        _
      $region38: #{autoencoder_forward.1} parent=5 // pred_check_branch
        %247 = sbr.rel (%p244) target = $region40
      $region39: #{autoencoder_forward.1} parent=5 // pred_region
        %s248 = ssub.s32 %s14, 1
        // Predicated region
        $region41: #{autoencoder_forward.1} parent=39 // pred_check
          %p249 = pneg %p47
        $region42: #{autoencoder_forward.1} parent=39 // pred_check_branch
          %251 = sbr.rel (%p249) target = $region44
        $region43: #{autoencoder_forward.1} parent=39 // pred_region
          %252 = dma.done [#allocation3], 64
        $region44: #{autoencoder_forward.1} parent=39 // pred_fallthru
          _
        // Predicated region
        $region45: #{autoencoder_forward.1} parent=39 // pred_check
          %p253 = pneg %p68
        $region46: #{autoencoder_forward.1} parent=39 // pred_check_branch
          %255 = sbr.rel (%p253) target = $region48
        $region47: #{autoencoder_forward.1} parent=39 // pred_region
          %256 = dma.done [#allocation5], 16
        $region48: #{autoencoder_forward.1} parent=39 // pred_fallthru
          _
        // Predicated region
        $region49: #{autoencoder_forward.1} parent=39 // pred_check
          %p257 = pneg %p89
        $region50: #{autoencoder_forward.1} parent=39 // pred_check_branch
          %259 = sbr.rel (%p257) target = $region52
        $region51: #{autoencoder_forward.1} parent=39 // pred_region
          %260 = dma.done [#allocation5], 64
        $region52: #{autoencoder_forward.1} parent=39 // pred_fallthru
          _
        // Predicated region
        $region53: #{autoencoder_forward.1} parent=39 // pred_check
          %p261 = pneg %p110
        $region54: #{autoencoder_forward.1} parent=39 // pred_check_branch
          %263 = sbr.rel (%p261) target = $region56
        $region55: #{autoencoder_forward.1} parent=39 // pred_region
          %264 = dma.done [#allocation8], 16
        $region56: #{autoencoder_forward.1} parent=39 // pred_fallthru
          _
        %265 = sfence
        %p266 = pneg %p47
        %p267 = pneg %p44
        %p268 = pneg %p68
        %p269 = pneg %p65
        %p270 = pneg %p89
        %p271 = pneg %p86
        %p272 = pneg %p110
        %p273 = pneg %p107
        %s274 = smul.u32 4, %s24
        %p275 = scmp.lt.s32.totalorder %s23, 1
        %s276 = scalar_select %p275, %s23, 1
        %p277 = scmp.lt.s32.totalorder %s274, 3
        %s278 = scalar_select %p277, %s274, 3
        %s279 = smul.addr %s276, 16
        %s280 = sadd.s32 %s278, %s279
        %s281 = smul.addr %s280, 8
        %s282 = scalar_lea.vmem %s4, %s281
        %p283 = pneg %p138
        %p284 = pneg %p135
        %p285 = pneg %p166
        %p286 = pneg %p163
        %s287 = smul.u32 4, %s24
        %p288 = scmp.lt.s32.totalorder %s23, 1
        %s289 = scalar_select %p288, %s23, 1
        %p290 = scmp.lt.s32.totalorder %s287, 3
        %s291 = scalar_select %p290, %s287, 3
        %s292 = smul.addr %s289, 16
        %s293 = sadd.s32 %s291, %s292
        %s294 = smul.addr %s293, 8
        %s295 = scalar_lea.vmem %s5, %s294
        %s296 = smul.u32 4, %s24
        %p297 = scmp.lt.s32.totalorder %s23, 1
        %s298 = scalar_select %p297, %s23, 1
        %p299 = scmp.lt.s32.totalorder %s296, 3
        %s300 = scalar_select %p299, %s296, 3
        %s301 = smul.addr %s298, 16
        %s302 = sadd.s32 %s300, %s301
        %s303 = smul.addr %s302, 8
        %s304 = scalar_lea.vmem %s4, %s303
        %s305 = smul.u32 4, %s24
        %s306 = smul.u32 4, %s24
        %p307 = scmp.lt.s32.totalorder %s23, 1
        %s308 = scalar_select %p307, %s23, 1
        %p309 = scmp.lt.s32.totalorder %s306, 3
        %s310 = scalar_select %p309, %s306, 3
        %s311 = smul.addr %s308, 16
        %s312 = sadd.s32 %s310, %s311
        %s313 = smul.addr %s312, 8
        %s314 = scalar_lea.vmem %s5, %s313
        %s315 = smul.u32 4, %s24
        %v316 = vld [vmem:[%s304] sm:$0xff]
        %v317 = vld [vmem:[%s304 + $0x8] sm:$0xff]
        %v318 = vld [vmem:[%s304 + $0x10] sm:$0xff]
        %v319 = vld [vmem:[%s304 + $0x18] sm:$0xff]
        %s320 = scalar_lea.vmem %s304, 32
        %v321 = vld [vmem:[%s320] sm:$0xff]
        %v322 = vld [vmem:[%s320 + $0x8] sm:$0xff]
        %v323 = vld [vmem:[%s320 + $0x10] sm:$0xff]
        %v324 = vld [vmem:[%s320 + $0x18] sm:$0xff]
        %s325 = scalar_lea.vmem %s304, 64
        %v326 = vld [vmem:[%s325] sm:$0xff]
        %v327 = vld [vmem:[%s325 + $0x8] sm:$0xff]
        %v328 = vld [vmem:[%s325 + $0x10] sm:$0xff]
        %v329 = vld [vmem:[%s325 + $0x18] sm:$0xff]
        %s330 = scalar_lea.vmem %s304, 96
        %v331 = vld [vmem:[%s330] sm:$0xff]
        %v332 = vld [vmem:[%s330 + $0x8] sm:$0xff]
        %v333 = vld [vmem:[%s330 + $0x10] sm:$0xff]
        %v334 = vld [vmem:[%s330 + $0x18] sm:$0xff]
        %s335 = sld [smem:[#allocation2]]
        %v336 = vstv %s335
        %v337 = vmul.f32 %v316, %v336
        %v338 = vmul.f32 %v317, %v336
        %v339 = vmul.f32 %v318, %v336
        %v340 = vmul.f32 %v319, %v336
        %s341 = sld [smem:[#allocation2 + $0x1]]
        %v342 = vstv %s341
        %v343 = vmul.f32 %v321, %v342
        %v344 = vmul.f32 %v322, %v342
        %v345 = vmul.f32 %v323, %v342
        %v346 = vmul.f32 %v324, %v342
        %v347 = vadd.f32 %v337, %v343
        %v348 = vadd.f32 %v338, %v344
        %v349 = vadd.f32 %v339, %v345
        %v350 = vadd.f32 %v340, %v346
        %s351 = sld [smem:[#allocation2 + $0x2]]
        %v352 = vstv %s351
        %v353 = vmul.f32 %v326, %v352
        %v354 = vmul.f32 %v327, %v352
        %v355 = vmul.f32 %v328, %v352
        %v356 = vmul.f32 %v329, %v352
        %v357 = vadd.f32 %v347, %v353
        %v358 = vadd.f32 %v348, %v354
        %v359 = vadd.f32 %v349, %v355
        %v360 = vadd.f32 %v350, %v356
        %s361 = sld [smem:[#allocation2 + $0x3]]
        %v362 = vstv %s361
        %v363 = vmul.f32 %v331, %v362
        %v364 = vmul.f32 %v332, %v362
        %v365 = vmul.f32 %v333, %v362
        %v366 = vmul.f32 %v334, %v362
        %v367 = vadd.f32 %v357, %v363
        %v368 = vadd.f32 %v358, %v364
        %v369 = vadd.f32 %v359, %v365
        %v370 = vadd.f32 %v360, %v366
        %s371 = sld [smem:[#allocation4]]
        %v372 = vstv %s371
        %v373 = vadd.f32 %v367, %v372
        %v374 = vadd.f32 %v368, %v372
        %v375 = vadd.f32 %v369, %v372
        %v376 = vadd.f32 %v370, %v372
        %v377 = vmax.f32 %v373, 0.0
        %v378 = vmax.f32 %v374, 0.0
        %v379 = vmax.f32 %v375, 0.0
        %v380 = vmax.f32 %v376, 0.0
        %s381 = sld [smem:[#allocation2 + $0x80]]
        %v382 = vstv %s381
        %v383 = vmul.f32 %v316, %v382
        %v384 = vmul.f32 %v317, %v382
        %v385 = vmul.f32 %v318, %v382
        %v386 = vmul.f32 %v319, %v382
        %s387 = sld [smem:[#allocation2 + $0x81]]
        %v388 = vstv %s387
        %v389 = vmul.f32 %v321, %v388
        %v390 = vmul.f32 %v322, %v388
        %v391 = vmul.f32 %v323, %v388
        %v392 = vmul.f32 %v324, %v388
        %v393 = vadd.f32 %v383, %v389
        %v394 = vadd.f32 %v384, %v390
        %v395 = vadd.f32 %v385, %v391
        %v396 = vadd.f32 %v386, %v392
        %s397 = sld [smem:[#allocation2 + $0x82]]
        %v398 = vstv %s397
        %v399 = vmul.f32 %v326, %v398
        %v400 = vmul.f32 %v327, %v398
        %v401 = vmul.f32 %v328, %v398
        %v402 = vmul.f32 %v329, %v398
        %v403 = vadd.f32 %v393, %v399
        %v404 = vadd.f32 %v394, %v400
        %v405 = vadd.f32 %v395, %v401
        %v406 = vadd.f32 %v396, %v402
        %s407 = sld [smem:[#allocation2 + $0x83]]
        %v408 = vstv %s407
        %v409 = vmul.f32 %v331, %v408
        %v410 = vmul.f32 %v332, %v408
        %v411 = vmul.f32 %v333, %v408
        %v412 = vmul.f32 %v334, %v408
        %v413 = vadd.f32 %v403, %v409
        %v414 = vadd.f32 %v404, %v410
        %v415 = vadd.f32 %v405, %v411
        %v416 = vadd.f32 %v406, %v412
        %s417 = sld [smem:[#allocation4 + $0x1]]
        %v418 = vstv %s417
        %v419 = vadd.f32 %v413, %v418
        %v420 = vadd.f32 %v414, %v418
        %v421 = vadd.f32 %v415, %v418
        %v422 = vadd.f32 %v416, %v418
        %v423 = vmax.f32 %v419, 0.0
        %v424 = vmax.f32 %v420, 0.0
        %v425 = vmax.f32 %v421, 0.0
        %v426 = vmax.f32 %v422, 0.0
        %s427 = sld [smem:[#allocation2 + $0x100]]
        %v428 = vstv %s427
        %v429 = vmul.f32 %v316, %v428
        %v430 = vmul.f32 %v317, %v428
        %v431 = vmul.f32 %v318, %v428
        %v432 = vmul.f32 %v319, %v428
        %s433 = sld [smem:[#allocation2 + $0x101]]
        %v434 = vstv %s433
        %v435 = vmul.f32 %v321, %v434
        %v436 = vmul.f32 %v322, %v434
        %v437 = vmul.f32 %v323, %v434
        %v438 = vmul.f32 %v324, %v434
        %v439 = vadd.f32 %v429, %v435
        %v440 = vadd.f32 %v430, %v436
        %v441 = vadd.f32 %v431, %v437
        %v442 = vadd.f32 %v432, %v438
        %s443 = sld [smem:[#allocation2 + $0x102]]
        %v444 = vstv %s443
        %v445 = vmul.f32 %v326, %v444
        %v446 = vmul.f32 %v327, %v444
        %v447 = vmul.f32 %v328, %v444
        %v448 = vmul.f32 %v329, %v444
        %v449 = vadd.f32 %v439, %v445
        %v450 = vadd.f32 %v440, %v446
        %v451 = vadd.f32 %v441, %v447
        %v452 = vadd.f32 %v442, %v448
        %s453 = sld [smem:[#allocation2 + $0x103]]
        %v454 = vstv %s453
        %v455 = vmul.f32 %v331, %v454
        %v456 = vmul.f32 %v332, %v454
        %v457 = vmul.f32 %v333, %v454
        %v458 = vmul.f32 %v334, %v454
        %v459 = vadd.f32 %v449, %v455
        %v460 = vadd.f32 %v450, %v456
        %v461 = vadd.f32 %v451, %v457
        %v462 = vadd.f32 %v452, %v458
        %s463 = sld [smem:[#allocation4 + $0x2]]
        %v464 = vstv %s463
        %v465 = vadd.f32 %v459, %v464
        %v466 = vadd.f32 %v460, %v464
        %v467 = vadd.f32 %v461, %v464
        %v468 = vadd.f32 %v462, %v464
        %v469 = vmax.f32 %v465, 0.0
        %v470 = vmax.f32 %v466, 0.0
        %v471 = vmax.f32 %v467, 0.0
        %v472 = vmax.f32 %v468, 0.0
        %s473 = sld [smem:[#allocation6]]
        %v474 = vstv %s473
        %v475 = vmul.f32 %v377, %v474
        %v476 = vmul.f32 %v378, %v474
        %v477 = vmul.f32 %v379, %v474
        %v478 = vmul.f32 %v380, %v474
        %s479 = sld [smem:[#allocation6 + $0x1]]
        %v480 = vstv %s479
        %v481 = vmul.f32 %v423, %v480
        %v482 = vmul.f32 %v424, %v480
        %v483 = vmul.f32 %v425, %v480
        %v484 = vmul.f32 %v426, %v480
        %v485 = vadd.f32 %v475, %v481
        %v486 = vadd.f32 %v476, %v482
        %v487 = vadd.f32 %v477, %v483
        %v488 = vadd.f32 %v478, %v484
        %s489 = sld [smem:[#allocation6 + $0x2]]
        %v490 = vstv %s489
        %v491 = vmul.f32 %v469, %v490
        %v492 = vmul.f32 %v470, %v490
        %v493 = vmul.f32 %v471, %v490
        %v494 = vmul.f32 %v472, %v490
        %v495 = vadd.f32 %v485, %v491
        %v496 = vadd.f32 %v486, %v492
        %v497 = vadd.f32 %v487, %v493
        %v498 = vadd.f32 %v488, %v494
        %s499 = sld [smem:[#allocation7]]
        %v500 = vstv %s499
        %v501 = vadd.f32 %v495, %v500
        %v502 = vadd.f32 %v496, %v500
        %v503 = vadd.f32 %v497, %v500
        %v504 = vadd.f32 %v498, %v500
        %v505 = vxor.u32 %v501, 2147483648
        %v506 = vxor.u32 %v502, 2147483648
        %v507 = vxor.u32 %v503, 2147483648
        %v508 = vxor.u32 %v504, 2147483648
        %v509 = vmul.f32 %v505, 1.442695
        %v510 = vpow.pop %v509
        %v511 = vmul.f32 %v506, 1.442695
        %v512 = vpow.pop %v511
        %v513 = vmul.f32 %v507, 1.442695
        %v514 = vpow.pop %v513
        %v515 = vmul.f32 %v508, 1.442695
        %v516 = vpow.pop %v515
        %v517 = vadd.f32 %v510, 1.0
        %v518 = vadd.f32 %v512, 1.0
        %v519 = vadd.f32 %v514, 1.0
        %v520 = vadd.f32 %v516, 1.0
        %v521 = vrcp.pop %v517
        %v522 = vmul.f32 1.0, %v521
        %v523 = vrcp.pop %v518
        %v524 = vmul.f32 1.0, %v523
        %v525 = vrcp.pop %v519
        %v526 = vmul.f32 1.0, %v525
        %v527 = vrcp.pop %v520
        %v528 = vmul.f32 1.0, %v527
        %529 = vst [vmem:[%s314] sm:$0xff] %v522
        %530 = vst [vmem:[%s314 + $0x8] sm:$0xff] %v524
        %531 = vst [vmem:[%s314 + $0x10] sm:$0xff] %v526
        %532 = vst [vmem:[%s314 + $0x18] sm:$0xff] %v528
        %s533 = sld [smem:[#allocation6 + $0x80]]
        %v534 = vstv %s533
        %v535 = vmul.f32 %v377, %v534
        %v536 = vmul.f32 %v378, %v534
        %v537 = vmul.f32 %v379, %v534
        %v538 = vmul.f32 %v380, %v534
        %s539 = sld [smem:[#allocation6 + $0x81]]
        %v540 = vstv %s539
        %v541 = vmul.f32 %v423, %v540
        %v542 = vmul.f32 %v424, %v540
        %v543 = vmul.f32 %v425, %v540
        %v544 = vmul.f32 %v426, %v540
        %v545 = vadd.f32 %v535, %v541
        %v546 = vadd.f32 %v536, %v542
        %v547 = vadd.f32 %v537, %v543
        %v548 = vadd.f32 %v538, %v544
        %s549 = sld [smem:[#allocation6 + $0x82]]
        %v550 = vstv %s549
        %v551 = vmul.f32 %v469, %v550
        %v552 = vmul.f32 %v470, %v550
        %v553 = vmul.f32 %v471, %v550
        %v554 = vmul.f32 %v472, %v550
        %v555 = vadd.f32 %v545, %v551
        %v556 = vadd.f32 %v546, %v552
        %v557 = vadd.f32 %v547, %v553
        %v558 = vadd.f32 %v548, %v554
        %s559 = sld [smem:[#allocation7 + $0x1]]
        %v560 = vstv %s559
        %v561 = vadd.f32 %v555, %v560
        %v562 = vadd.f32 %v556, %v560
        %v563 = vadd.f32 %v557, %v560
        %v564 = vadd.f32 %v558, %v560
        %v565 = vxor.u32 %v561, 2147483648
        %v566 = vxor.u32 %v562, 2147483648
        %v567 = vxor.u32 %v563, 2147483648
        %v568 = vxor.u32 %v564, 2147483648
        %v569 = vmul.f32 %v565, 1.442695
        %v570 = vpow.pop %v569
        %v571 = vmul.f32 %v566, 1.442695
        %v572 = vpow.pop %v571
        %v573 = vmul.f32 %v567, 1.442695
        %v574 = vpow.pop %v573
        %v575 = vmul.f32 %v568, 1.442695
        %v576 = vpow.pop %v575
        %v577 = vadd.f32 %v570, 1.0
        %v578 = vadd.f32 %v572, 1.0
        %v579 = vadd.f32 %v574, 1.0
        %v580 = vadd.f32 %v576, 1.0
        %v581 = vrcp.pop %v577
        %v582 = vmul.f32 1.0, %v581
        %v583 = vrcp.pop %v578
        %v584 = vmul.f32 1.0, %v583
        %v585 = vrcp.pop %v579
        %v586 = vmul.f32 1.0, %v585
        %v587 = vrcp.pop %v580
        %v588 = vmul.f32 1.0, %v587
        %s589 = scalar_lea.vmem %s314, 32
        %590 = vst [vmem:[%s589] sm:$0xff] %v582
        %591 = vst [vmem:[%s589 + $0x8] sm:$0xff] %v584
        %592 = vst [vmem:[%s589 + $0x10] sm:$0xff] %v586
        %593 = vst [vmem:[%s589 + $0x18] sm:$0xff] %v588
        %s594 = sld [smem:[#allocation6 + $0x100]]
        %v595 = vstv %s594
        %v596 = vmul.f32 %v377, %v595
        %v597 = vmul.f32 %v378, %v595
        %v598 = vmul.f32 %v379, %v595
        %v599 = vmul.f32 %v380, %v595
        %s600 = sld [smem:[#allocation6 + $0x101]]
        %v601 = vstv %s600
        %v602 = vmul.f32 %v423, %v601
        %v603 = vmul.f32 %v424, %v601
        %v604 = vmul.f32 %v425, %v601
        %v605 = vmul.f32 %v426, %v601
        %v606 = vadd.f32 %v596, %v602
        %v607 = vadd.f32 %v597, %v603
        %v608 = vadd.f32 %v598, %v604
        %v609 = vadd.f32 %v599, %v605
        %s610 = sld [smem:[#allocation6 + $0x102]]
        %v611 = vstv %s610
        %v612 = vmul.f32 %v469, %v611
        %v613 = vmul.f32 %v470, %v611
        %v614 = vmul.f32 %v471, %v611
        %v615 = vmul.f32 %v472, %v611
        %v616 = vadd.f32 %v606, %v612
        %v617 = vadd.f32 %v607, %v613
        %v618 = vadd.f32 %v608, %v614
        %v619 = vadd.f32 %v609, %v615
        %s620 = sld [smem:[#allocation7 + $0x2]]
        %v621 = vstv %s620
        %v622 = vadd.f32 %v616, %v621
        %v623 = vadd.f32 %v617, %v621
        %v624 = vadd.f32 %v618, %v621
        %v625 = vadd.f32 %v619, %v621
        %v626 = vxor.u32 %v622, 2147483648
        %v627 = vxor.u32 %v623, 2147483648
        %v628 = vxor.u32 %v624, 2147483648
        %v629 = vxor.u32 %v625, 2147483648
        %v630 = vmul.f32 %v626, 1.442695
        %v631 = vpow.pop %v630
        %v632 = vmul.f32 %v627, 1.442695
        %v633 = vpow.pop %v632
        %v634 = vmul.f32 %v628, 1.442695
        %v635 = vpow.pop %v634
        %v636 = vmul.f32 %v629, 1.442695
        %v637 = vpow.pop %v636
        %v638 = vadd.f32 %v631, 1.0
        %v639 = vadd.f32 %v633, 1.0
        %v640 = vadd.f32 %v635, 1.0
        %v641 = vadd.f32 %v637, 1.0
        %v642 = vrcp.pop %v638
        %v643 = vmul.f32 1.0, %v642
        %v644 = vrcp.pop %v639
        %v645 = vmul.f32 1.0, %v644
        %v646 = vrcp.pop %v640
        %v647 = vmul.f32 1.0, %v646
        %v648 = vrcp.pop %v641
        %v649 = vmul.f32 1.0, %v648
        %s650 = scalar_lea.vmem %s314, 64
        %651 = vst [vmem:[%s650] sm:$0xff] %v643
        %652 = vst [vmem:[%s650 + $0x8] sm:$0xff] %v645
        %653 = vst [vmem:[%s650 + $0x10] sm:$0xff] %v647
        %654 = vst [vmem:[%s650 + $0x18] sm:$0xff] %v649
        %s655 = sld [smem:[#allocation6 + $0x180]]
        %v656 = vstv %s655
        %v657 = vmul.f32 %v377, %v656
        %v658 = vmul.f32 %v378, %v656
        %v659 = vmul.f32 %v379, %v656
        %v660 = vmul.f32 %v380, %v656
        %s661 = sld [smem:[#allocation6 + $0x181]]
        %v662 = vstv %s661
        %v663 = vmul.f32 %v423, %v662
        %v664 = vmul.f32 %v424, %v662
        %v665 = vmul.f32 %v425, %v662
        %v666 = vmul.f32 %v426, %v662
        %v667 = vadd.f32 %v657, %v663
        %v668 = vadd.f32 %v658, %v664
        %v669 = vadd.f32 %v659, %v665
        %v670 = vadd.f32 %v660, %v666
        %s671 = sld [smem:[#allocation6 + $0x182]]
        %v672 = vstv %s671
        %v673 = vmul.f32 %v469, %v672
        %v674 = vmul.f32 %v470, %v672
        %v675 = vmul.f32 %v471, %v672
        %v676 = vmul.f32 %v472, %v672
        %v677 = vadd.f32 %v667, %v673
        %v678 = vadd.f32 %v668, %v674
        %v679 = vadd.f32 %v669, %v675
        %v680 = vadd.f32 %v670, %v676
        %s681 = sld [smem:[#allocation7 + $0x3]]
        %v682 = vstv %s681
        %v683 = vadd.f32 %v677, %v682
        %v684 = vadd.f32 %v678, %v682
        %v685 = vadd.f32 %v679, %v682
        %v686 = vadd.f32 %v680, %v682
        %v687 = vxor.u32 %v683, 2147483648
        %v688 = vxor.u32 %v684, 2147483648
        %v689 = vxor.u32 %v685, 2147483648
        %v690 = vxor.u32 %v686, 2147483648
        %v691 = vmul.f32 %v687, 1.442695
        %v692 = vpow.pop %v691
        %v693 = vmul.f32 %v688, 1.442695
        %v694 = vpow.pop %v693
        %v695 = vmul.f32 %v689, 1.442695
        %v696 = vpow.pop %v695
        %v697 = vmul.f32 %v690, 1.442695
        %v698 = vpow.pop %v697
        %v699 = vadd.f32 %v692, 1.0
        %v700 = vadd.f32 %v694, 1.0
        %v701 = vadd.f32 %v696, 1.0
        %v702 = vadd.f32 %v698, 1.0
        %v703 = vrcp.pop %v699
        %v704 = vmul.f32 1.0, %v703
        %v705 = vrcp.pop %v700
        %v706 = vmul.f32 1.0, %v705
        %v707 = vrcp.pop %v701
        %v708 = vmul.f32 1.0, %v707
        %v709 = vrcp.pop %v702
        %v710 = vmul.f32 1.0, %v709
        %s711 = scalar_lea.vmem %s314, 96
        %712 = vst [vmem:[%s711] sm:$0xff] %v704
        %713 = vst [vmem:[%s711 + $0x8] sm:$0xff] %v706
        %714 = vst [vmem:[%s711 + $0x10] sm:$0xff] %v708
        %715 = vst [vmem:[%s711 + $0x18] sm:$0xff] %v710
        %s716 = smul.u32 4, %s24
        %p717 = scmp.lt.s32.totalorder %s23, 1
        %s718 = scalar_select %p717, %s23, 1
        %p719 = scmp.lt.s32.totalorder %s716, 3
        %s720 = scalar_select %p719, %s716, 3
        %s721 = smul.addr %s718, 16
        %s722 = sadd.s32 %s720, %s721
        %s723 = smul.addr %s722, 8
        %s724 = scalar_lea.vmem %s5, %s723
        // Predicated region
        $region57: #{autoencoder_forward.1} parent=39 // pred_check
          %p725 = pneg %p163
        $region58: #{autoencoder_forward.1} parent=39 // pred_check_branch
          %727 = sbr.rel (%p725) target = $region60
        $region59: #{autoencoder_forward.1} parent=39 // pred_region
          %s728 = smul.u32 4, %s24
        $region60: #{autoencoder_forward.1} parent=39 // pred_fallthru
          _
      $region40: #{autoencoder_forward.1} parent=5 // pred_fallthru
        _
      %p729 = scmp.le.s32.totalorder 2, %s14
      // Predicated region
      $region61: #{autoencoder_forward.1} parent=5 // pred_check
        %p730 = pneg %p729
      $region62: #{autoencoder_forward.1} parent=5 // pred_check_branch
        %732 = sbr.rel (%p730) target = $region64
      $region63: #{autoencoder_forward.1} parent=5 // pred_region
        %s733 = ssub.s32 %s14, 2
        // Predicated region
        $region65: #{autoencoder_forward.1} parent=63 // pred_check
          %p734 = pneg %p169
        $region66: #{autoencoder_forward.1} parent=63 // pred_check_branch
          %736 = sbr.rel (%p734) target = $region68
        $region67: #{autoencoder_forward.1} parent=63 // pred_region
          %s737 = smul.u32 4, %s26
          %p738 = scmp.lt.s32.totalorder %s25, 1
          %s739 = scalar_select %p738, %s25, 1
          %p740 = scmp.lt.s32.totalorder %s737, 3
          %s741 = scalar_select %p740, %s737, 3
          %s742 = smul.addr %s739, 16
          %s743 = sadd.s32 %s741, %s742
          %s744 = smul.addr %s743, 8
          %s745 = scalar_lea.vmem %s5, %s744
        $region68: #{autoencoder_forward.1} parent=63 // pred_fallthru
          _
      $region64: #{autoencoder_forward.1} parent=5 // pred_fallthru
        _
    $region6: #{autoencoder_forward.1} parent=1 // loop_footer
      %s18 = sadd.s32 1, %s14
    $region7: #{autoencoder_forward.1} parent=1 // loop_footer_branch
      %13 = sbr.rel target = $region3
    $region8: #{autoencoder_forward.1} parent=1 // loop_exit
      _
    %746 = vsyncpa [#allocation3], 1
    %s747 = scalar_lea.sflag [#allocation3], 1
    %748 = vsyncpa %s747, 1
    %749 = vsyncpa [#allocation5], 1
    %750 = vsyncpa [#allocation8], 1

</llo_original>
